<compile_context>
chip_gen: v7x
topology: tpu7x:2x2x1
jax: 0.10.0
libtpu: 0.0.40
codegen_flags: <defaults>
</compile_context>

<pallas_src>
import functools

import jax
import jax.numpy as jnp
from jax.experimental import pallas as pl
from jax.experimental.pallas import tpu as pltpu


def _smnn_kernel(sc_ref, x_ref, w_ref, out_ref, *, K, h_Kp):
    """One batch tile: one MXU call for all K groups (bias folded into the
    contraction) + vectorized stabilized logsumexp / soft-min."""
    inv_exp_beta = sc_ref[0]          # exp(-beta), precomputed in wrapper (SMEM)
    gamma = sc_ref[1]

    w = w_ref[...]                    # (K*h_Kp, n+1)  = [z*z | t]  (VMEM-resident)
    x = x_ref[...]                    # (n+1, TB)      = [x ; 1], batch on lanes

    # a[j, b] = sum_f w[j, f] * x[f, b]  -> (K*h_Kp, TB).  Contraction axes
    # already match (no operand relayout); bias is the augmented last column.
    a = jnp.dot(w, x, preferred_element_type=jnp.float32)

    tb = a.shape[1]
    a3 = a.reshape(K, h_Kp, tb)       # h_Kp % 8 == 0, TB % 128 == 0 -> view

    # Per-group soft_max = logsumexp over h_Kp.  Padded rows carry a -1e30
    # bias so exp() underflows to 0 and they contribute nothing.
    m = jnp.max(a3, axis=1, keepdims=True)                        # (K, 1, TB)
    g = jnp.log(jnp.sum(jnp.exp(a3 - m), axis=1)) + m[:, 0, :]    # (K, TB)

    # soft_min over the K groups: -logsumexp(-g).
    neg_g = -g
    m2 = jnp.max(neg_g, axis=0, keepdims=True)                    # (1, TB)
    s = jnp.sum(jnp.exp(neg_g - m2), axis=0, keepdims=True)       # (1, TB)
    soft_min = -(jnp.log(s) + m2)                                 # (1, TB)

    out_ref[...] = (soft_min * inv_exp_beta + gamma).reshape(out_ref.shape)


def smooth_monotonic_nn_forward(x, z, t, beta, gamma, *, block_b=512):
    """x: (B, n) f32; z: (K, h_K, n); t: (K, h_K); beta, gamma scalars. -> (B,)."""
    x = jnp.asarray(x, jnp.float32)
    z = jnp.asarray(z, jnp.float32)
    t = jnp.asarray(t, jnp.float32)
    B, n = x.shape
    K, h_K, n2 = z.shape
    assert n2 == n and t.shape == (K, h_K)

    # --- grid-invariant precompute (hoisted out of the per-step kernel body) ---
    # Pad h_K to a multiple of 8 (f32 sublane) so the in-kernel reshape stays a
    # tile-aligned view.  Padded rows: zero weights + -1e30 bias (killed by exp).
    h_Kp = max(8, ((h_K + 7) // 8) * 8)
    w = z * z                                                   # dangling-else of ref
    w_aug = jnp.concatenate([w, t[..., None]], axis=-1)         # (K, h_K, n+1)
    if h_Kp != h_K:
        pad = jnp.zeros((K, h_Kp - h_K, n + 1), jnp.float32)
        pad = pad.at[..., -1].set(-1e30)
        w_aug = jnp.concatenate([w_aug, pad], axis=1)           # (K, h_Kp, n+1)
    w_aug = w_aug.reshape(K * h_Kp, n + 1)

    scalars = jnp.stack([jnp.exp(-jnp.asarray(beta, jnp.float32).reshape(())),
                         jnp.asarray(gamma, jnp.float32).reshape(())])  # (2,) -> SMEM

    # --- batch tile selection: multiple of 128 (unmasked stores), VMEM-capped ---
    if B >= block_b:
        TB = block_b
    else:
        TB = ((B + 127) // 128) * 128
    vmem_budget = 24 * 1024 * 1024      # leave headroom vs. 32 MiB scoped default

    def footprint(tb):                  # 2x-buffered x + resident w + 2x-buffered out
        return 4 * (2 * tb * (n + 1) + K * h_Kp * (n + 1) + 2 * tb)

    while TB > 128 and footprint(TB) > vmem_budget:
        TB //= 2
    TB = max(TB, 128)

    B_pad = ((B + TB - 1) // TB) * TB
    num_tiles = B_pad // TB

    # Feature-major augmented input: (n+1, B_pad); padded rows are zeros (finite).
    x_pad = jnp.pad(x, ((0, B_pad - B), (0, 0))) if B_pad != B else x
    x_aug = jnp.concatenate([x_pad, jnp.ones((B_pad, 1), jnp.float32)], axis=1).T

    cost = pl.CostEstimate(
        flops=int(2 * B_pad * (n + 1) * K * h_Kp),
        transcendentals=int(B_pad * (K * h_Kp + 2 * K + 1)),
        bytes_accessed=int(4 * (x_aug.size + w_aug.size + B_pad)),
    )

    kernel = functools.partial(_smnn_kernel, K=K, h_Kp=h_Kp)
    out = pl.pallas_call(
        kernel,
        out_shape=jax.ShapeDtypeStruct((num_tiles, 1, TB), jnp.float32),
        grid_spec=pltpu.PrefetchScalarGridSpec(
            num_scalar_prefetch=1,                        # [exp(-beta), gamma] -> SMEM
            grid=(num_tiles,),
            in_specs=[
                pl.BlockSpec((n + 1, TB), lambda i, sc: (0, i)),        # x tile (lane-dense)
                pl.BlockSpec((K * h_Kp, n + 1), lambda i, sc: (0, 0)),  # weights (resident)
            ],
            out_specs=pl.BlockSpec((1, 1, TB), lambda i, sc: (i, 0, 0)),
        ),
        compiler_params=pltpu.CompilerParams(
            dimension_semantics=("parallel",)),           # megacore sharding on v7x
        cost_estimate=cost,
    )(scalars, x_aug, w_aug)
    return out.reshape(B_pad)[:B]


def _reference_forward(x, z, t, beta, gamma):
    """Pure-JAX reference mirroring the PyTorch module (dangling-else included)."""
    K = z.shape[0]
    gs = []
    for k in range(K):
        w = z[k] * z[k]
        a = x @ w.T + t[k]
        gs.append(jax.scipy.special.logsumexp(a, axis=1))
    y = jnp.stack(gs, axis=1)
    return -jax.scipy.special.logsumexp(-y, axis=1) / jnp.exp(beta) + gamma


if __name__ == "__main__":
    key = jax.random.PRNGKey(0)
    kx, kz, kt, kx2, kz2, kt2, kx3 = jax.random.split(key, 7)

    # Module hyper-parameters (small, consistent with __init__ / reset_parameters()).
    n, K, h_K = 8, 4, 8
    b_z, b_t, beta_init = 1.0, 1.0, -1.0
    z = jax.random.truncated_normal(kz, -2.0, 2.0, (K, h_K, n), jnp.float32) * b_z
    t = jax.random.truncated_normal(kt, -2.0, 2.0, (K, h_K), jnp.float32) * b_t
    beta = jnp.asarray(beta_init, jnp.float32)
    gamma = jnp.asarray(0.0, jnp.float32)

    # 1) Small batch (single tile, TB rounded to 128, batch zero-padded).
    B = 8
    x = jax.random.normal(kx, (B, n), jnp.float32)
    y = jax.block_until_ready(smooth_monotonic_nn_forward(x, z, t, beta, gamma))
    y_ref = _reference_forward(x, z, t, beta, gamma)
    assert y.shape == (B,)
    assert jnp.allclose(y, y_ref, rtol=1e-5, atol=1e-5), (y, y_ref)

    # 2) Larger batch: multi-tile grid, parallel semantics, lane-dense stores.
    B2 = 1000
    x2 = jax.random.normal(kx2, (B2, n), jnp.float32)
    y2 = jax.block_until_ready(smooth_monotonic_nn_forward(x2, z, t, beta, gamma))
    y2_ref = _reference_forward(x2, z, t, beta, gamma)
    assert y2.shape == (B2,)
    assert jnp.allclose(y2, y2_ref, rtol=1e-5, atol=1e-5)

    # 3) h_K not a multiple of 8: exercises the padded-row (-1e30 bias) path.
    n3, K3, h3 = 4, 3, 5
    z3 = jax.random.truncated_normal(kz2, -2.0, 2.0, (K3, h3, n3), jnp.float32)
    t3 = jax.random.truncated_normal(kt2, -2.0, 2.0, (K3, h3), jnp.float32)
    x3 = jax.random.normal(kx3, (17, n3), jnp.float32)
    y3 = jax.block_until_ready(smooth_monotonic_nn_forward(x3, z3, t3, beta, gamma))
    y3_ref = _reference_forward(x3, z3, t3, beta, gamma)
    assert jnp.allclose(y3, y3_ref, rtol=1e-5, atol=1e-5)

    print("KERNEL_OK")
</pallas_src>

<mosaic_0001>
module attributes {stable_mosaic.version = 11 : i64} {
  func.func @_smnn_kernel(%arg0: i32, %arg1: memref<2xf32, #tpu.memory_space<smem>>, %arg2: memref<9x128xf32, #tpu.memory_space<vmem>>, %arg3: memref<32x9xf32, #tpu.memory_space<vmem>>, %arg4: memref<1x1x128xf32, #tpu.memory_space<vmem>>) attributes {dimension_semantics = [#tpu.dimension_semantics<parallel>], iteration_bounds = array<i64: 1>, scalar_prefetch = 1 : i64, scratch_operands = 0 : i64, tpu.core_type = #tpu.core_type<tc>, window_params = [{transform_indices = @transform_0, window_bounds = array<i64: 9, 128>}, {pipeline_mode = #tpu.pipeline_mode<synchronous>, transform_indices = @transform_1, window_bounds = array<i64: 32, 9>}, {transform_indices = @transform_2, window_bounds = array<i64: 1, 1, 128>}]} {
    %c0 = arith.constant 0 : index
    %0 = memref.load %arg1[%c0] : memref<2xf32, #tpu.memory_space<smem>>
    %c1 = arith.constant 1 : index
    %1 = memref.load %arg1[%c1] : memref<2xf32, #tpu.memory_space<smem>>
    %c0_0 = arith.constant 0 : index
    %c0_1 = arith.constant 0 : index
    %2 = vector.load %arg3[%c0_0, %c0_1] : memref<32x9xf32, #tpu.memory_space<vmem>>, vector<32x9xf32>
    %c0_2 = arith.constant 0 : index
    %c0_3 = arith.constant 0 : index
    %3 = vector.load %arg2[%c0_2, %c0_3] : memref<9x128xf32, #tpu.memory_space<vmem>>, vector<9x128xf32>
    %cst = arith.constant dense<0.000000e+00> : vector<32x128xf32>
    %4 = tpu.matmul %2, %3, %cst {dimension_numbers = #tpu.dot_dimension_numbers<[1], [0], [0], [1], [0, 0, 1, 1], [], []>} : vector<32x9xf32>, vector<9x128xf32>, vector<32x128xf32> -> vector<32x128xf32>
    %5 = vector.shape_cast %4 : vector<32x128xf32> to vector<4x8x128xf32>
    %cst_4 = arith.constant dense<0xFF800000> : vector<4x128xf32>
    %6 = vector.multi_reduction <maximumf>, %5, %cst_4 [1] : vector<4x8x128xf32> to vector<4x128xf32>
    %7 = vector.shape_cast %6 : vector<4x128xf32> to vector<4x1x128xf32>
    %8 = vector.broadcast %7 : vector<4x1x128xf32> to vector<4x8x128xf32>
    %9 = arith.subf %5, %8 : vector<4x8x128xf32>
    %10 = math.exp %9 : vector<4x8x128xf32>
    %cst_5 = arith.constant dense<0.000000e+00> : vector<4x128xf32>
    %11 = vector.multi_reduction <add>, %10, %cst_5 [1] : vector<4x8x128xf32> to vector<4x128xf32>
    %12 = math.log %11 : vector<4x128xf32>
    %13 = vector.shape_cast %7 : vector<4x1x128xf32> to vector<4x128xf32>
    %14 = arith.addf %12, %13 : vector<4x128xf32>
    %cst_6 = arith.constant 0.000000e+00 : f32
    %15 = vector.broadcast %cst_6 : f32 to vector<4x128xf32>
    %16 = arith.subf %15, %14 : vector<4x128xf32>
    %cst_7 = arith.constant dense<0xFF800000> : vector<128xf32>
    %17 = vector.multi_reduction <maximumf>, %16, %cst_7 [0] : vector<4x128xf32> to vector<128xf32>
    %18 = vector.shape_cast %17 : vector<128xf32> to vector<1x128xf32>
    %19 = vector.broadcast %18 : vector<1x128xf32> to vector<4x128xf32>
    %20 = arith.subf %16, %19 : vector<4x128xf32>
    %21 = math.exp %20 : vector<4x128xf32>
    %cst_8 = arith.constant dense<0.000000e+00> : vector<128xf32>
    %22 = vector.multi_reduction <add>, %21, %cst_8 [0] : vector<4x128xf32> to vector<128xf32>
    %23 = vector.shape_cast %22 : vector<128xf32> to vector<1x128xf32>
    %24 = math.log %23 : vector<1x128xf32>
    %25 = arith.addf %24, %18 : vector<1x128xf32>
    %cst_9 = arith.constant 0.000000e+00 : f32
    %26 = vector.broadcast %cst_9 : f32 to vector<1x128xf32>
    %27 = arith.subf %26, %25 : vector<1x128xf32>
    %28 = vector.broadcast %0 : f32 to vector<1x128xf32>
    %29 = arith.mulf %27, %28 : vector<1x128xf32>
    %30 = vector.broadcast %1 : f32 to vector<1x128xf32>
    %31 = arith.addf %29, %30 : vector<1x128xf32>
    %32 = vector.shape_cast %31 : vector<1x128xf32> to vector<1x1x128xf32>
    %c0_10 = arith.constant 0 : index
    %c0_11 = arith.constant 0 : index
    %c0_12 = arith.constant 0 : index
    %33 = vector.load %arg4[%c0_10, %c0_11, %c0_12] : memref<1x1x128xf32, #tpu.memory_space<vmem>>, vector<1x1x128xf32>
    tpu.vector_store %arg4[%c0_10, %c0_11, %c0_12], %32 {strides = array<i32>} : memref<1x1x128xf32, #tpu.memory_space<vmem>>, vector<1x1x128xf32>,
    return
  }
  func.func @transform_0(%arg0: i32, %arg1: memref<2xf32, #tpu.memory_space<smem>>) -> (i32, i32) {
    %c0_i32 = arith.constant 0 : i32
    %c0_i32_0 = arith.constant 0 : i32
    return %c0_i32, %arg0 : i32, i32
  }
  func.func @transform_1(%arg0: i32, %arg1: memref<2xf32, #tpu.memory_space<smem>>) -> (i32, i32) {
    %c0_i32 = arith.constant 0 : i32
    %c0_i32_0 = arith.constant 0 : i32
    %c0_i32_1 = arith.constant 0 : i32
    return %c0_i32, %c0_i32_0 : i32, i32
  }
  func.func @transform_2(%arg0: i32, %arg1: memref<2xf32, #tpu.memory_space<smem>>) -> (i32, i32, i32) {
    %c0_i32 = arith.constant 0 : i32
    %c0_i32_0 = arith.constant 0 : i32
    %c0_i32_1 = arith.constant 0 : i32
    return %arg0, %c0_i32, %c0_i32_0 : i32, i32, i32
  }
}

</mosaic_0001>

<llo_original>
// kernel: tpu_custom_call.1
$region0: #{tpu_custom_call.1}
  #allocation0 [shape = 'u32[]', space=smem, size = 0x4, offset = 0x4, fixed_abs, tag = 'smem constant byte address 0x4 - core index']
  #allocation1 [shape = 'u32[144,128]{1,0:T(1,128)}', space=vmem, size = 0x12000, scoped, tag = 'internal scratch']
  #allocation2 [shape = 's32[1]{0}', space=sflag, size = 0x4, scoped, tag = 'scoped memory for tpu_custom_call.1']
  #allocation3 [shape = 'u8[512]{0}', space=smem, size = 0x200, scoped, tag = 'prefetched SMEM operand 0']
  %s0 = inlined_call_operand.vmem [shape: f32[2], index: 0, kind: input, shape index: {}]
  %s1 = inlined_call_operand.vmem [shape: f32[9,128], index: 1, kind: input, shape index: {}]
  %s2 = inlined_call_operand.vmem [shape: f32[32,9], index: 2, kind: input, shape index: {}]
  %s3 = inlined_call_operand.hbm [shape: f32[1,1,128], index: 3, kind: output, shape index: {}]
  %s4 = sld [smem:[#allocation0]]
  $region18: #{tpu_custom_call.1} parent=0
    _
  %s6 = ssub.s32 1, %s4
  %s7 = scalar_select 0, %s6, %s4
  %s8 = sshll.u32 %s0, 4
  %s9 = int_to_ptr.vmem [resolvable:$true] %s8
  %11 = dma.vmem_to_smem %s9, 16, [#allocation3], [#allocation2]
  %12 = dma.done [#allocation2], 16
  %13 = sfence
  $region1: #{tpu_custom_call.1} parent=0
    #allocation4 [shape = 'u8[512]{0}', space=vmem, size = 0x400, scoped, tag = 'output window, operand 0, single buffered']
    #allocation5 [shape = 's32[1]{0}', space=sflag, size = 0x4, scoped, tag = 'scoped memory for tpu_custom_call.1']
    %14 = vsyncpa [#allocation5], 0
    // Predicated region
    $region2: #{tpu_custom_call.1} parent=1 // pred_check
      _
    $region3: #{tpu_custom_call.1} parent=1 // pred_check_branch
      %16 = sbr.rel (0) target = $region5
    $region4: #{tpu_custom_call.1} parent=1 // pred_region
      _
    $region5: #{tpu_custom_call.1} parent=1 // pred_fallthru
      _
    // Predicated region
    $region6: #{tpu_custom_call.1} parent=1 // pred_check
      _
    $region7: #{tpu_custom_call.1} parent=1 // pred_check_branch
      %18 = sbr.rel (0) target = $region9
    $region8: #{tpu_custom_call.1} parent=1 // pred_region
      _
    $region9: #{tpu_custom_call.1} parent=1 // pred_fallthru
      _
    %s19 = sld [smem:[#allocation3]]
    %s20 = sld [smem:[#allocation3 + $0x1]]
    %v21 = vld [vmem:[%s2] sm:$0xff]
    %v22 = vld [vmem:[%s2 + $0x8] sm:$0xff]
    %v23 = vld [vmem:[%s2 + $0x10] sm:$0xff]
    %v24 = vld [vmem:[%s2 + $0x18] sm:$0xff]
    %v25 = vld [vmem:[%s1] sm:$0xff]
    %v26 = vld [vmem:[%s1 + $0x8] sm:$0x1]
    %vm27 = vcmask 72704
    %v29 = vsel %vm27, %v21, 0
    %v32 = vsel %vm27, %v22, 0
    %v35 = vsel %vm27, %v23, 0
    %v38 = vsel %vm27, %v24, 0
    %vm40 = vcmask 1040384
    %v42 = vsel %vm40, %v26, 0
    %44 = vmatprep.subr.mxu0 0.0
    %45 = vmatpush1.msra.mxu0 %v25
    %46 = vmatprep.subr.mxu0 0.0
    %47 = vmatpush1.msra.mxu0 %v42
    %48 = vmatprep.subr.mxu0 0.0
    %49 = vmatpush1.msra.mxu0 0.0
    %50 = vmatprep.subr.mxu0 0.0
    %51 = vmatpush1.msra.mxu0 0.0
    %52 = vmatprep.subr.mxu0 0.0
    %53 = vmatpush1.msra.mxu0 0.0
    %54 = vmatprep.subr.mxu0 0.0
    %55 = vmatpush1.msra.mxu0 0.0
    %56 = vmatprep.subr.mxu0 0.0
    %57 = vmatpush1.msra.mxu0 0.0
    %58 = vmatprep.subr.mxu0 0.0
    %59 = vmatpush1.msra.mxu0 0.0
    %60 = vmatprep.subr.mxu0 0.0
    %61 = vmatpush1.msra.mxu0 0.0
    %62 = vmatprep.subr.mxu0 0.0
    %63 = vmatpush1.msra.mxu0 0.0
    %64 = vmatprep.subr.mxu0 0.0
    %65 = vmatpush1.msra.mxu0 0.0
    %66 = vmatprep.subr.mxu0 0.0
    %67 = vmatpush1.msra.mxu0 0.0
    %68 = vmatprep.subr.mxu0 0.0
    %69 = vmatpush1.msra.mxu0 0.0
    %70 = vmatprep.subr.mxu0 0.0
    %71 = vmatpush1.msra.mxu0 0.0
    %72 = vmatprep.subr.mxu0 0.0
    %73 = vmatpush1.msra.mxu0 0.0
    %74 = vmatprep.subr.mxu0 0.0
    %75 = vmatpush1.msra.mxu0 0.0
    %76 = vmatprep.subr.mxu0 0.0
    %77 = vmatpush1.msra.mxu0 0.0
    %78 = vmatprep.subr.mxu0 0.0
    %79 = vmatpush1.msra.mxu0 0.0
    %80 = vmatprep.subr.mxu0 0.0
    %81 = vmatpush1.msra.mxu0 0.0
    %82 = vmatprep.subr.mxu0 0.0
    %83 = vmatpush1.msra.mxu0 0.0
    %84 = vmatprep.subr.mxu0 0.0
    %85 = vmatpush1.msra.mxu0 0.0
    %86 = vmatprep.subr.mxu0 0.0
    %87 = vmatpush1.msra.mxu0 0.0
    %88 = vmatprep.subr.mxu0 0.0
    %89 = vmatpush1.msra.mxu0 0.0
    %90 = vmatprep.subr.mxu0 0.0
    %91 = vmatpush1.msra.mxu0 0.0
    %92 = vmatprep.subr.mxu0 0.0
    %93 = vmatpush1.msra.mxu0 0.0
    %94 = vmatprep.subr.mxu0 0.0
    %95 = vmatpush1.msra.mxu0 0.0
    %96 = vmatprep.subr.mxu0 0.0
    %97 = vmatpush1.msra.mxu0 0.0
    %98 = vmatprep.subr.mxu0 0.0
    %99 = vmatpush1.msra.mxu0 0.0
    %100 = vmatprep.subr.mxu0 0.0
    %101 = vmatpush1.msra.mxu0 0.0
    %102 = vmatprep.subr.mxu0 0.0
    %103 = vmatpush1.msra.mxu0 0.0
    %104 = vmatprep.subr.mxu0 0.0
    %105 = vmatpush1.msra.mxu0 0.0
    %106 = vmatprep.subr.mxu0 0.0
    %107 = vmatpush1.msra.mxu0 0.0
    %108 = vmatprep.mubr.f32.mxu0 0.0
    %109 = vmatmul.mubr.f32.gmra.mrb[0].mxu0 %v29
    %v110 = vpop.f32.mrb[0].mxu0
    %v111 = vadd.f32 0.0, %v110
    %v112 = vpop.f32.mrb[0].mxu0
    %113 = vmatprep.mubr.f32.mxu0 0.0
    %114 = vmatmul.mubr.f32.gmra.mrb[0].mxu0 %v32
    %v115 = vpop.f32.mrb[0].mxu0
    %v116 = vadd.f32 0.0, %v115
    %v117 = vpop.f32.mrb[0].mxu0
    %118 = vmatprep.mubr.f32.mxu0 0.0
    %119 = vmatmul.mubr.f32.gmra.mrb[0].mxu0 %v35
    %v120 = vpop.f32.mrb[0].mxu0
    %v121 = vadd.f32 0.0, %v120
    %v122 = vpop.f32.mrb[0].mxu0
    %123 = vmatprep.mubr.f32.mxu0 0.0
    %124 = vmatmul.mubr.f32.gmra.mrb[0].mxu0 %v38
    %v125 = vpop.f32.mrb[0].mxu0
    %v126 = vadd.f32 0.0, %v125
    %v127 = vpop.f32.mrb[0].mxu0
    %128 = vdwg.mxu0
    %v129 = vrot.slane %v111, 4
    %v130 = vmax.f32 %v111, %v129
    %v131 = vrot.slane %v130, 2
    %v132 = vmax.f32 %v130, %v131
    %v133 = vrot.slane %v132, 1
    %v134 = vmax.f32 %v132, %v133
    %v135 = vrot.slane %v116, 4
    %v136 = vmax.f32 %v116, %v135
    %v137 = vrot.slane %v136, 2
    %v138 = vmax.f32 %v136, %v137
    %v139 = vrot.slane %v138, 1
    %v140 = vmax.f32 %v138, %v139
    %v141 = vrot.slane %v121, 4
    %v142 = vmax.f32 %v121, %v141
    %v143 = vrot.slane %v142, 2
    %v144 = vmax.f32 %v142, %v143
    %v145 = vrot.slane %v144, 1
    %v146 = vmax.f32 %v144, %v145
    %v147 = vrot.slane %v126, 4
    %v148 = vmax.f32 %v126, %v147
    %v149 = vrot.slane %v148, 2
    %v150 = vmax.f32 %v148, %v149
    %v151 = vrot.slane %v150, 1
    %v152 = vmax.f32 %v150, %v151
    %v153 = vsub.f32 %v111, %v134
    %v154 = vsub.f32 %v116, %v140
    %v155 = vsub.f32 %v121, %v146
    %v156 = vsub.f32 %v126, %v152
    %v157 = vmul.f32 %v153, 1.442695
    %v158 = vpow.pop %v157
    %v159 = vmul.f32 %v154, 1.442695
    %v160 = vpow.pop %v159
    %v161 = vmul.f32 %v155, 1.442695
    %v162 = vpow.pop %v161
    %v163 = vmul.f32 %v156, 1.442695
    %v164 = vpow.pop %v163
    %v165 = vrot.slane %v158, 4
    %v166 = vadd.f32 %v158, %v165
    %v167 = vrot.slane %v166, 2
    %v168 = vadd.f32 %v166, %v167
    %v169 = vrot.slane %v168, 1
    %v170 = vadd.f32 %v168, %v169
    %v171 = vrot.slane %v160, 4
    %v172 = vadd.f32 %v160, %v171
    %v173 = vrot.slane %v172, 2
    %v174 = vadd.f32 %v172, %v173
    %v175 = vrot.slane %v174, 1
    %v176 = vadd.f32 %v174, %v175
    %v177 = vrot.slane %v162, 4
    %v178 = vadd.f32 %v162, %v177
    %v179 = vrot.slane %v178, 2
    %v180 = vadd.f32 %v178, %v179
    %v181 = vrot.slane %v180, 1
    %v182 = vadd.f32 %v180, %v181
    %v183 = vrot.slane %v164, 4
    %v184 = vadd.f32 %v164, %v183
    %v185 = vrot.slane %v184, 2
    %v186 = vadd.f32 %v184, %v185
    %v187 = vrot.slane %v186, 1
    %v188 = vadd.f32 %v186, %v187
    %v189 = vlog2.pop %v170
    %v190 = vmul.f32 %v189, 0.6931472
    %v191 = vlog2.pop %v176
    %v192 = vmul.f32 %v191, 0.6931472
    %v193 = vlog2.pop %v182
    %v194 = vmul.f32 %v193, 0.6931472
    %v195 = vlog2.pop %v188
    %v196 = vmul.f32 %v195, 0.6931472
    %v197 = vadd.f32 %v190, %v134
    %v198 = vadd.f32 %v192, %v140
    %v199 = vadd.f32 %v194, %v146
    %v200 = vadd.f32 %v196, %v152
    %v201 = vsub.f32 0.0, %v197
    %v202 = vsub.f32 0.0, %v198
    %v203 = vsub.f32 0.0, %v199
    %v204 = vsub.f32 0.0, %v200
    %v205 = vmax.f32 %v201, %v202
    %v206 = vmax.f32 %v203, %v204
    %v207 = vmax.f32 %v205, %v206
    %v208 = vsub.f32 %v201, %v207
    %v209 = vsub.f32 %v202, %v207
    %v210 = vsub.f32 %v203, %v207
    %v211 = vsub.f32 %v204, %v207
    %v212 = vmul.f32 %v208, 1.442695
    %v213 = vpow.pop %v212
    %v214 = vmul.f32 %v209, 1.442695
    %v215 = vpow.pop %v214
    %v216 = vmul.f32 %v210, 1.442695
    %v217 = vpow.pop %v216
    %v218 = vmul.f32 %v211, 1.442695
    %v219 = vpow.pop %v218
    %v224 = vrot.slane %v215, 7
    %vm225 = vcmask 1041409
    %v226 = vsel %vm225, %v224, %v213
    %v227 = vrot.slane %v217, 6
    %vm228 = vcmask 1042434
    %v229 = vsel %vm228, %v227, %v226
    %v230 = vrot.slane %v219, 5
    %vm231 = vcmask 1043459
    %v232 = vsel %vm231, %v230, %v229
    %vm234 = vcmask 1043456
    %v235 = vsel %vm234, %v232, 0.0
    %v236 = vrot.slane %v235, 4
    %v237 = vadd.f32 %v235, %v236
    %v238 = vrot.slane %v237, 2
    %v239 = vadd.f32 %v237, %v238
    %v240 = vrot.slane %v239, 1
    %v241 = vadd.f32 %v239, %v240
    %v242 = vlog2.pop %v241
    %v243 = vmul.f32 %v242, 0.6931472
    %v244 = vadd.f32 %v243, %v207
    %v245 = vsub.f32 0.0, %v244
    %v246 = vstv %s19
    %v247 = vmul.f32 %v245, %v246
    %v248 = vstv %s20
    %v249 = vadd.f32 %v247, %v248
    %250 = vst [vmem:[#allocation4] sm:$0x1] %v249
    // Predicated region
    $region10: #{tpu_custom_call.1} parent=1 // pred_check
      _
    $region11: #{tpu_custom_call.1} parent=1 // pred_check_branch
      %252 = sbr.rel (0) target = $region13
    $region12: #{tpu_custom_call.1} parent=1 // pred_region
      %s254 = ssub.s32 16, 16
      %255 = vsyncadd [#allocation5], %s254
      %s257 = sshll.u32 [#allocation4], 4
      %s258 = int_to_ptr.vmem [resolvable:$true] %s257
      %260 = dma.vmem_to_hbm [thread:$0]  %s258, 16, %s3, [#allocation5]
    $region13: #{tpu_custom_call.1} parent=1 // pred_fallthru
      _
    // Predicated region
    $region14: #{tpu_custom_call.1} parent=1 // pred_check
      _
    $region15: #{tpu_custom_call.1} parent=1 // pred_check_branch
      %262 = sbr.rel (0) target = $region17
    $region16: #{tpu_custom_call.1} parent=1 // pred_region
      %263 = dma.done [#allocation5], 16
    $region17: #{tpu_custom_call.1} parent=1 // pred_fallthru
      _
    %264 = vsyncpa [#allocation5], 1

</llo_original>
